<compile_context>
chip_gen: v7x
topology: tpu7x:2x2x1
jax: 0.10.0
libtpu: 0.0.40
codegen_flags: <defaults>
</compile_context>

<pallas_src>
import math
import functools

import jax
import jax.numpy as jnp
from jax import lax
from jax.experimental import pallas as pl
from jax.experimental.pallas import tpu as pltpu

_R = 8  # timesteps folded per scan block (== sublane count)


def _s5_kernel(ca_ref, ab_ref, wt_ref, ar_ref, x0_ref, u_ref, y_ref, x_scratch):
    """Grid = (batch_group, seq_chunk).  Block-scan over T_SEQ timesteps.

    Shapes (lanes = b_tile * d_model):
      ca_ref : (R, d_state, lanes)   CA[i]  = C  * A^(i+1)
      ab_ref : (R, d_state, lanes)   AB[j]  = A^(R-1-j) * B
      wt_ref : (R, R, lanes)         Wt[j][i] = sum_s C*A^(i-j)*B  (0 for i<j)
      ar_ref : (d_state, lanes)      A^R
      x0_ref : (d_state, lanes)      initial state
      u_ref  : (T_SEQ, lanes)        inputs,   y_ref same shape
    """
    # Reset the recurrent state at the start of every batch group.
    @pl.when(pl.program_id(1) == 0)
    def _():
        x_scratch[...] = x0_ref[...]

    r = ca_ref.shape[0]
    ar = ar_ref[...]                                         # (d_state, lanes)

    t_seq = u_ref.shape[0]                                   # multiple of R
    n_blocks = t_seq // r

    def body(blk, x):
        base = pl.multiple_of(blk * r, r)
        u_blk = u_ref[pl.ds(base, r), :]                     # aligned (R, lanes)

        # y contribution from the block-entry state: all R rows independent.
        y_rows = [jnp.sum(ca_ref[i] * x, axis=0, keepdims=True) for i in range(r)]
        y_state = jnp.concatenate(y_rows, axis=0)            # (R, lanes)

        # y contribution from the block inputs (lower-triangular mini-conv)
        # and the input part of the carry update -- both independent of x.
        u_0 = u_blk[0:1, :]
        y_in = wt_ref[0] * u_0                               # (R, lanes)
        inp = ab_ref[0] * u_0                                # (d_state, lanes)
        for j in range(1, r):                                # trace-time unroll
            u_j = u_blk[j:j + 1, :]
            y_in = y_in + wt_ref[j] * u_j
            inp = inp + ab_ref[j] * u_j

        y_ref[pl.ds(base, r), :] = y_state + y_in

        # Serial cross-block chain is now just one mul + one add.
        return ar * x + inp

    # State lives in the loop carry; write back once for the next seq chunk.
    x_scratch[...] = lax.fori_loop(0, n_blocks, body, x_scratch[...])


@functools.partial(jax.jit, static_argnames=("dt_scale", "t_seq"))
def s5_ssm_forward(u, log_dt, A_real, B, C, x0, dt_scale=1.0, t_seq=256):
    """u: (batch, seq_len, d_model) float32 -> y: (batch, seq_len, d_model)."""
    u = u.astype(jnp.float32)
    batch, seq_len, d_model = u.shape
    d_state = A_real.shape[1]

    # ---- discretization hoisted out of the kernel (stable expm1 form) ----
    A_real_f = A_real.astype(jnp.float32)
    dt = jnp.exp(log_dt.astype(jnp.float32)) * dt_scale            # (d_model,)
    z = A_real_f * dt[:, None]                                     # (d_model, d_state)
    a_tilde = jnp.exp(z)
    b_tilde = (-jnp.expm1(z) / A_real_f) * B.astype(jnp.float32)   # == (1-exp(z))*B/A

    # ---- batch lane-packing: fill lanes up to 128 with a batch tile ----
    b_tile = 1
    for cand in range(1, batch + 1):
        if batch % cand == 0 and cand * d_model <= 128:
            b_tile = cand
    lanes = b_tile * d_model
    n_groups = batch // b_tile

    # ---- sequence chunking (chunk must be a multiple of the block size) ----
    t_seq = max(_R, (int(t_seq) // _R) * _R)
    seq_pad_r = ((seq_len + _R - 1) // _R) * _R
    t_seq = min(t_seq, seq_pad_r)
    seq_pad = ((seq_len + t_seq - 1) // t_seq) * t_seq
    n_chunks = seq_pad // t_seq

    # ---- pack params to (d_state, lanes) ----
    def pack(p):  # (d_model, d_state) -> (d_state, b_tile * d_model)
        return jnp.tile(jnp.transpose(p).astype(jnp.float32), (1, b_tile))

    a_p = pack(a_tilde)
    b_p = pack(b_tilde)
    c_p = pack(C)
    x0_p = pack(x0)

    # ---- block-scan coefficients (all powers of A hoisted to the wrapper) ----
    pows = [jnp.ones_like(a_p)]
    for _ in range(_R):
        pows.append(pows[-1] * a_p)
    A_pows = jnp.stack(pows)                                   # (R+1, d_state, lanes)
    ca = c_p[None] * A_pows[1:_R + 1]                          # CA[i] = C * A^(i+1)
    ab = jnp.flip(A_pows[:_R], axis=0) * b_p[None]             # AB[j] = A^(R-1-j) * B
    ar = A_pows[_R]                                            # A^R
    wk = jnp.sum(c_p[None] * A_pows[:_R] * b_p[None], axis=1)  # (R, lanes): sum_s C*A^k*B
    ii = jnp.arange(_R)[None, :]                               # output step i
    jj = jnp.arange(_R)[:, None]                               # input step j
    sel = ii - jj                                              # (R_j, R_i)
    wt = jnp.where((sel >= 0)[:, :, None],
                   wk[jnp.clip(sel, 0, _R - 1)], 0.0)          # (R_j, R_i, lanes)

    # ---- pack u to (n_groups, seq_pad, lanes) ----
    u_pad = jnp.pad(u, ((0, 0), (0, seq_pad - seq_len), (0, 0)))
    u_pk = u_pad.reshape(n_groups, b_tile, seq_pad, d_model)
    u_pk = jnp.transpose(u_pk, (0, 2, 1, 3)).reshape(n_groups, seq_pad, lanes)

    p3 = lambda g, s: (0, 0, 0)
    p2 = lambda g, s: (0, 0)
    chunk3d = lambda g, s: (g, s, 0)

    grid_spec = pltpu.PrefetchScalarGridSpec(
        num_scalar_prefetch=0,
        grid=(n_groups, n_chunks),
        in_specs=[
            pl.BlockSpec((_R, d_state, lanes), p3),       # CA
            pl.BlockSpec((_R, d_state, lanes), p3),       # AB
            pl.BlockSpec((_R, _R, lanes), p3),            # Wt
            pl.BlockSpec((d_state, lanes), p2),           # A^R
            pl.BlockSpec((d_state, lanes), p2),           # x0
            pl.BlockSpec((None, t_seq, lanes), chunk3d),  # u chunk (group squeezed)
        ],
        out_specs=pl.BlockSpec((None, t_seq, lanes), chunk3d),
        scratch_shapes=[pltpu.VMEM((d_state, lanes), jnp.float32)],
    )

    # Explicit VMEM budget: double-buffered u/y chunks + coefficient tables.
    chunk_bytes = t_seq * lanes * 4
    param3_bytes = _R * d_state * lanes * 4
    param2_bytes = d_state * lanes * 4
    wt_bytes = _R * _R * lanes * 4
    vmem_est = (2 * 2 * chunk_bytes
                + 2 * (2 * param3_bytes + wt_bytes + 2 * param2_bytes)
                + param2_bytes + (4 << 20))
    vmem_limit = int(min(64 << 20, max(16 << 20, 2 * vmem_est)))

    y_pk = pl.pallas_call(
        _s5_kernel,
        out_shape=jax.ShapeDtypeStruct((n_groups, seq_pad, lanes), jnp.float32),
        grid_spec=grid_spec,
        compiler_params=pltpu.CompilerParams(
            dimension_semantics=("parallel", "arbitrary"),
            vmem_limit_bytes=vmem_limit,
        ),
    )(ca, ab, wt, ar, x0_p, u_pk)

    # ---- unpack lanes back to (batch, seq_len, d_model) ----
    y = y_pk.reshape(n_groups, seq_pad, b_tile, d_model)
    y = jnp.transpose(y, (0, 2, 1, 3)).reshape(batch, seq_pad, d_model)
    return y[:, :seq_len, :]


def s5_ssm_reference(u, log_dt, A_real, B, C, x0, dt_scale=1.0):
    """Pure-JAX reference mirroring the PyTorch forward."""
    dt = jnp.exp(log_dt) * dt_scale                          # (d_model,)
    A_tilde = jnp.exp(A_real * dt[:, None])                  # (d_model, d_state)
    B_tilde = (1.0 - A_tilde) * B / A_real
    batch = u.shape[0]
    x = jnp.broadcast_to(x0, (batch,) + x0.shape)            # (b, d_model, d_state)

    def step(x, u_t):                                        # u_t: (b, d_model)
        x = A_tilde[None] * x + B_tilde[None] * u_t[:, :, None]
        y = jnp.sum(C[None] * x, axis=-1)                    # (b, d_model)
        return x, y

    _, ys = lax.scan(step, x, jnp.swapaxes(u, 0, 1))         # (seq, b, d_model)
    return jnp.swapaxes(ys, 0, 1)


def init_params(key, d_model, d_state, dt_min=0.001, dt_max=0.1):
    """Deterministic init matching the PyTorch __init__ shapes/distributions."""
    k1, k2, k3, k4 = jax.random.split(key, 4)
    log_dt = (
        jax.random.uniform(k1, (d_model,))
        * (math.log(dt_max) - math.log(dt_min))
        + math.log(dt_min)
    )
    A_real = -jnp.exp(jax.random.uniform(k2, (d_model, d_state)) * 2.0 - 1.0)
    B = jax.random.normal(k3, (d_model, d_state))
    C = jax.random.normal(k4, (d_model, d_state))
    x0 = jnp.zeros((d_model, d_state))
    return log_dt, A_real, B, C, x0


if __name__ == "__main__":
    batch, seq_len, d_model, d_state = 2, 16, 32, 64
    key = jax.random.PRNGKey(0)
    k_u, k_p = jax.random.split(key)

    u = jax.random.normal(k_u, (batch, seq_len, d_model), dtype=jnp.float32)
    log_dt, A_real, B, C, x0 = init_params(k_p, d_model, d_state)

    # t_seq=8 so the demo exercises the seq-chunk grid axis (2 chunks), the
    # block scan, and the state carry across chunks.
    y_kernel = s5_ssm_forward(u, log_dt, A_real, B, C, x0, dt_scale=1.0, t_seq=8)
    jax.block_until_ready(y_kernel)

    y_ref = s5_ssm_reference(u, log_dt, A_real, B, C, x0, dt_scale=1.0)
    assert y_kernel.shape == (batch, seq_len, d_model)
    err = float(jnp.max(jnp.abs(y_kernel - y_ref)))
    assert jnp.allclose(y_kernel, y_ref, atol=1e-3, rtol=1e-3), err
    print("KERNEL_OK")
</pallas_src>

<mosaic_0001>
module attributes {stable_mosaic.version = 11 : i64} {
  func.func @_s5_kernel(%arg0: i32, %arg1: i32, %arg2: memref<8x64x64xf32, #tpu.memory_space<vmem>>, %arg3: memref<8x64x64xf32, #tpu.memory_space<vmem>>, %arg4: memref<8x8x64xf32, #tpu.memory_space<vmem>>, %arg5: memref<64x64xf32, #tpu.memory_space<vmem>>, %arg6: memref<64x64xf32, #tpu.memory_space<vmem>>, %arg7: memref<1x8x64xf32, #tpu.memory_space<vmem>>, %arg8: memref<1x8x64xf32, #tpu.memory_space<vmem>>, %arg9: memref<64x64xf32, #tpu.memory_space<vmem>>) attributes {dimension_semantics = [#tpu.dimension_semantics<parallel>, #tpu.dimension_semantics<arbitrary>], iteration_bounds = array<i64: 1, 2>, scalar_prefetch = 0 : i64, scratch_operands = 1 : i64, tpu.core_type = #tpu.core_type<tc>, window_params = [{pipeline_mode = #tpu.pipeline_mode<synchronous>, transform_indices = @transform_0, window_bounds = array<i64: 8, 64, 64>}, {pipeline_mode = #tpu.pipeline_mode<synchronous>, transform_indices = @transform_1, window_bounds = array<i64: 8, 64, 64>}, {pipeline_mode = #tpu.pipeline_mode<synchronous>, transform_indices = @transform_2, window_bounds = array<i64: 8, 8, 64>}, {pipeline_mode = #tpu.pipeline_mode<synchronous>, transform_indices = @transform_3, window_bounds = array<i64: 64, 64>}, {pipeline_mode = #tpu.pipeline_mode<synchronous>, transform_indices = @transform_4, window_bounds = array<i64: 64, 64>}, {transform_indices = @transform_5, window_bounds = array<i64: 1, 8, 64>}, {transform_indices = @transform_6, window_bounds = array<i64: 1, 8, 64>}]} {
    %c0_i32 = arith.constant 0 : i32
    %0 = arith.cmpi eq, %arg1, %c0_i32 : i32
    %1 = arith.extui %0 : i1 to i32
    %c0_i32_0 = arith.constant 0 : i32
    %2 = arith.cmpi ne, %1, %c0_i32_0 : i32
    scf.if %2 {
      %c0_83 = arith.constant 0 : index
      %c0_84 = arith.constant 0 : index
      %145 = vector.load %arg6[%c0_83, %c0_84] : memref<64x64xf32, #tpu.memory_space<vmem>>, vector<64x64xf32>
      %c0_85 = arith.constant 0 : index
      %c0_86 = arith.constant 0 : index
      %146 = vector.load %arg9[%c0_85, %c0_86] : memref<64x64xf32, #tpu.memory_space<vmem>>, vector<64x64xf32>
      tpu.vector_store %arg9[%c0_85, %c0_86], %145 {strides = array<i32>} : memref<64x64xf32, #tpu.memory_space<vmem>>, vector<64x64xf32>,
    } else {
    }
    %c0 = arith.constant 0 : index
    %c0_1 = arith.constant 0 : index
    %3 = vector.load %arg5[%c0, %c0_1] : memref<64x64xf32, #tpu.memory_space<vmem>>, vector<64x64xf32>
    %c0_2 = arith.constant 0 : index
    %c0_3 = arith.constant 0 : index
    %4 = vector.load %arg9[%c0_2, %c0_3] : memref<64x64xf32, #tpu.memory_space<vmem>>, vector<64x64xf32>
    %c0_i32_4 = arith.constant 0 : i32
    %c8_i32 = arith.constant 8 : i32
    %5 = arith.muli %c0_i32_4, %c8_i32 : i32
    %6 = tpu.assume_multiple %5, 8 : i32
    %c0_5 = arith.constant 0 : index
    %7 = arith.index_cast %6 : i32 to index
    %c0_6 = arith.constant 0 : index
    %8 = vector.load %arg7[%c0_5, %7, %c0_6] : memref<1x8x64xf32, #tpu.memory_space<vmem>>, vector<1x8x64xf32>
    %9 = vector.shape_cast %8 : vector<1x8x64xf32> to vector<8x64xf32>
    %c0_7 = arith.constant 0 : index
    %c0_8 = arith.constant 0 : index
    %c0_9 = arith.constant 0 : index
    %10 = vector.load %arg2[%c0_7, %c0_8, %c0_9] : memref<8x64x64xf32, #tpu.memory_space<vmem>>, vector<1x64x64xf32>
    %11 = vector.shape_cast %10 : vector<1x64x64xf32> to vector<64x64xf32>
    %12 = arith.mulf %11, %4 : vector<64x64xf32>
    %cst = arith.constant dense<0.000000e+00> : vector<64xf32>
    %13 = vector.multi_reduction <add>, %12, %cst [0] : vector<64x64xf32> to vector<64xf32>
    %14 = vector.shape_cast %13 : vector<64xf32> to vector<1x64xf32>
    %c1 = arith.constant 1 : index
    %c0_10 = arith.constant 0 : index
    %c0_11 = arith.constant 0 : index
    %15 = vector.load %arg2[%c1, %c0_10, %c0_11] : memref<8x64x64xf32, #tpu.memory_space<vmem>>, vector<1x64x64xf32>
    %16 = vector.shape_cast %15 : vector<1x64x64xf32> to vector<64x64xf32>
    %17 = arith.mulf %16, %4 : vector<64x64xf32>
    %cst_12 = arith.constant dense<0.000000e+00> : vector<64xf32>
    %18 = vector.multi_reduction <add>, %17, %cst_12 [0] : vector<64x64xf32> to vector<64xf32>
    %19 = vector.shape_cast %18 : vector<64xf32> to vector<1x64xf32>
    %c2 = arith.constant 2 : index
    %c0_13 = arith.constant 0 : index
    %c0_14 = arith.constant 0 : index
    %20 = vector.load %arg2[%c2, %c0_13, %c0_14] : memref<8x64x64xf32, #tpu.memory_space<vmem>>, vector<1x64x64xf32>
    %21 = vector.shape_cast %20 : vector<1x64x64xf32> to vector<64x64xf32>
    %22 = arith.mulf %21, %4 : vector<64x64xf32>
    %cst_15 = arith.constant dense<0.000000e+00> : vector<64xf32>
    %23 = vector.multi_reduction <add>, %22, %cst_15 [0] : vector<64x64xf32> to vector<64xf32>
    %24 = vector.shape_cast %23 : vector<64xf32> to vector<1x64xf32>
    %c3 = arith.constant 3 : index
    %c0_16 = arith.constant 0 : index
    %c0_17 = arith.constant 0 : index
    %25 = vector.load %arg2[%c3, %c0_16, %c0_17] : memref<8x64x64xf32, #tpu.memory_space<vmem>>, vector<1x64x64xf32>
    %26 = vector.shape_cast %25 : vector<1x64x64xf32> to vector<64x64xf32>
    %27 = arith.mulf %26, %4 : vector<64x64xf32>
    %cst_18 = arith.constant dense<0.000000e+00> : vector<64xf32>
    %28 = vector.multi_reduction <add>, %27, %cst_18 [0] : vector<64x64xf32> to vector<64xf32>
    %29 = vector.shape_cast %28 : vector<64xf32> to vector<1x64xf32>
    %c4 = arith.constant 4 : index
    %c0_19 = arith.constant 0 : index
    %c0_20 = arith.constant 0 : index
    %30 = vector.load %arg2[%c4, %c0_19, %c0_20] : memref<8x64x64xf32, #tpu.memory_space<vmem>>, vector<1x64x64xf32>
    %31 = vector.shape_cast %30 : vector<1x64x64xf32> to vector<64x64xf32>
    %32 = arith.mulf %31, %4 : vector<64x64xf32>
    %cst_21 = arith.constant dense<0.000000e+00> : vector<64xf32>
    %33 = vector.multi_reduction <add>, %32, %cst_21 [0] : vector<64x64xf32> to vector<64xf32>
    %34 = vector.shape_cast %33 : vector<64xf32> to vector<1x64xf32>
    %c5 = arith.constant 5 : index
    %c0_22 = arith.constant 0 : index
    %c0_23 = arith.constant 0 : index
    %35 = vector.load %arg2[%c5, %c0_22, %c0_23] : memref<8x64x64xf32, #tpu.memory_space<vmem>>, vector<1x64x64xf32>
    %36 = vector.shape_cast %35 : vector<1x64x64xf32> to vector<64x64xf32>
    %37 = arith.mulf %36, %4 : vector<64x64xf32>
    %cst_24 = arith.constant dense<0.000000e+00> : vector<64xf32>
    %38 = vector.multi_reduction <add>, %37, %cst_24 [0] : vector<64x64xf32> to vector<64xf32>
    %39 = vector.shape_cast %38 : vector<64xf32> to vector<1x64xf32>
    %c6 = arith.constant 6 : index
    %c0_25 = arith.constant 0 : index
    %c0_26 = arith.constant 0 : index
    %40 = vector.load %arg2[%c6, %c0_25, %c0_26] : memref<8x64x64xf32, #tpu.memory_space<vmem>>, vector<1x64x64xf32>
    %41 = vector.shape_cast %40 : vector<1x64x64xf32> to vector<64x64xf32>
    %42 = arith.mulf %41, %4 : vector<64x64xf32>
    %cst_27 = arith.constant dense<0.000000e+00> : vector<64xf32>
    %43 = vector.multi_reduction <add>, %42, %cst_27 [0] : vector<64x64xf32> to vector<64xf32>
    %44 = vector.shape_cast %43 : vector<64xf32> to vector<1x64xf32>
    %c7 = arith.constant 7 : index
    %c0_28 = arith.constant 0 : index
    %c0_29 = arith.constant 0 : index
    %45 = vector.load %arg2[%c7, %c0_28, %c0_29] : memref<8x64x64xf32, #tpu.memory_space<vmem>>, vector<1x64x64xf32>
    %46 = vector.shape_cast %45 : vector<1x64x64xf32> to vector<64x64xf32>
    %47 = arith.mulf %46, %4 : vector<64x64xf32>
    %cst_30 = arith.constant dense<0.000000e+00> : vector<64xf32>
    %48 = vector.multi_reduction <add>, %47, %cst_30 [0] : vector<64x64xf32> to vector<64xf32>
    %49 = vector.shape_cast %48 : vector<64xf32> to vector<1x64xf32>
    %50 = tpu.concatenate %14, %19, %24, %29, %34, %39, %44, %49 in 0 : vector<1x64xf32>, vector<1x64xf32>, vector<1x64xf32>, vector<1x64xf32>, vector<1x64xf32>, vector<1x64xf32>, vector<1x64xf32>, vector<1x64xf32> -> vector<8x64xf32>
    %51 = vector.extract_strided_slice %9 {offsets = [0, 0], sizes = [1, 64], strides = [1, 1]} : vector<8x64xf32> to vector<1x64xf32>
    %c0_31 = arith.constant 0 : index
    %c0_32 = arith.constant 0 : index
    %c0_33 = arith.constant 0 : index
    %52 = vector.load %arg4[%c0_31, %c0_32, %c0_33] : memref<8x8x64xf32, #tpu.memory_space<vmem>>, vector<1x8x64xf32>
    %53 = vector.shape_cast %52 : vector<1x8x64xf32> to vector<8x64xf32>
    %54 = vector.broadcast %51 : vector<1x64xf32> to vector<8x64xf32>
    %55 = arith.mulf %53, %54 : vector<8x64xf32>
    %c0_34 = arith.constant 0 : index
    %c0_35 = arith.constant 0 : index
    %c0_36 = arith.constant 0 : index
    %56 = vector.load %arg3[%c0_34, %c0_35, %c0_36] : memref<8x64x64xf32, #tpu.memory_space<vmem>>, vector<1x64x64xf32>
    %57 = vector.shape_cast %56 : vector<1x64x64xf32> to vector<64x64xf32>
    %58 = vector.broadcast %51 : vector<1x64xf32> to vector<64x64xf32>
    %59 = arith.mulf %57, %58 : vector<64x64xf32>
    %60 = vector.extract_strided_slice %9 {offsets = [1, 0], sizes = [1, 64], strides = [1, 1]} : vector<8x64xf32> to vector<1x64xf32>
    %c1_37 = arith.constant 1 : index
    %c0_38 = arith.constant 0 : index
    %c0_39 = arith.constant 0 : index
    %61 = vector.load %arg4[%c1_37, %c0_38, %c0_39] : memref<8x8x64xf32, #tpu.memory_space<vmem>>, vector<1x8x64xf32>
    %62 = vector.shape_cast %61 : vector<1x8x64xf32> to vector<8x64xf32>
    %63 = vector.broadcast %60 : vector<1x64xf32> to vector<8x64xf32>
    %64 = arith.mulf %62, %63 : vector<8x64xf32>
    %65 = arith.addf %55, %64 : vector<8x64xf32>
    %c1_40 = arith.constant 1 : index
    %c0_41 = arith.constant 0 : index
    %c0_42 = arith.constant 0 : index
    %66 = vector.load %arg3[%c1_40, %c0_41, %c0_42] : memref<8x64x64xf32, #tpu.memory_space<vmem>>, vector<1x64x64xf32>
    %67 = vector.shape_cast %66 : vector<1x64x64xf32> to vector<64x64xf32>
    %68 = vector.broadcast %60 : vector<1x64xf32> to vector<64x64xf32>
    %69 = arith.mulf %67, %68 : vector<64x64xf32>
    %70 = arith.addf %59, %69 : vector<64x64xf32>
    %71 = vector.extract_strided_slice %9 {offsets = [2, 0], sizes = [1, 64], strides = [1, 1]} : vector<8x64xf32> to vector<1x64xf32>
    %c2_43 = arith.constant 2 : index
    %c0_44 = arith.constant 0 : index
    %c0_45 = arith.constant 0 : index
    %72 = vector.load %arg4[%c2_43, %c0_44, %c0_45] : memref<8x8x64xf32, #tpu.memory_space<vmem>>, vector<1x8x64xf32>
    %73 = vector.shape_cast %72 : vector<1x8x64xf32> to vector<8x64xf32>
    %74 = vector.broadcast %71 : vector<1x64xf32> to vector<8x64xf32>
    %75 = arith.mulf %73, %74 : vector<8x64xf32>
    %76 = arith.addf %65, %75 : vector<8x64xf32>
    %c2_46 = arith.constant 2 : index
    %c0_47 = arith.constant 0 : index
    %c0_48 = arith.constant 0 : index
    %77 = vector.load %arg3[%c2_46, %c0_47, %c0_48] : memref<8x64x64xf32, #tpu.memory_space<vmem>>, vector<1x64x64xf32>
    %78 = vector.shape_cast %77 : vector<1x64x64xf32> to vector<64x64xf32>
    %79 = vector.broadcast %71 : vector<1x64xf32> to vector<64x64xf32>
    %80 = arith.mulf %78, %79 : vector<64x64xf32>
    %81 = arith.addf %70, %80 : vector<64x64xf32>
    %82 = vector.extract_strided_slice %9 {offsets = [3, 0], sizes = [1, 64], strides = [1, 1]} : vector<8x64xf32> to vector<1x64xf32>
    %c3_49 = arith.constant 3 : index
    %c0_50 = arith.constant 0 : index
    %c0_51 = arith.constant 0 : index
    %83 = vector.load %arg4[%c3_49, %c0_50, %c0_51] : memref<8x8x64xf32, #tpu.memory_space<vmem>>, vector<1x8x64xf32>
    %84 = vector.shape_cast %83 : vector<1x8x64xf32> to vector<8x64xf32>
    %85 = vector.broadcast %82 : vector<1x64xf32> to vector<8x64xf32>
    %86 = arith.mulf %84, %85 : vector<8x64xf32>
    %87 = arith.addf %76, %86 : vector<8x64xf32>
    %c3_52 = arith.constant 3 : index
    %c0_53 = arith.constant 0 : index
    %c0_54 = arith.constant 0 : index
    %88 = vector.load %arg3[%c3_52, %c0_53, %c0_54] : memref<8x64x64xf32, #tpu.memory_space<vmem>>, vector<1x64x64xf32>
    %89 = vector.shape_cast %88 : vector<1x64x64xf32> to vector<64x64xf32>
    %90 = vector.broadcast %82 : vector<1x64xf32> to vector<64x64xf32>
    %91 = arith.mulf %89, %90 : vector<64x64xf32>
    %92 = arith.addf %81, %91 : vector<64x64xf32>
    %93 = vector.extract_strided_slice %9 {offsets = [4, 0], sizes = [1, 64], strides = [1, 1]} : vector<8x64xf32> to vector<1x64xf32>
    %c4_55 = arith.constant 4 : index
    %c0_56 = arith.constant 0 : index
    %c0_57 = arith.constant 0 : index
    %94 = vector.load %arg4[%c4_55, %c0_56, %c0_57] : memref<8x8x64xf32, #tpu.memory_space<vmem>>, vector<1x8x64xf32>
    %95 = vector.shape_cast %94 : vector<1x8x64xf32> to vector<8x64xf32>
    %96 = vector.broadcast %93 : vector<1x64xf32> to vector<8x64xf32>
    %97 = arith.mulf %95, %96 : vector<8x64xf32>
    %98 = arith.addf %87, %97 : vector<8x64xf32>
    %c4_58 = arith.constant 4 : index
    %c0_59 = arith.constant 0 : index
    %c0_60 = arith.constant 0 : index
    %99 = vector.load %arg3[%c4_58, %c0_59, %c0_60] : memref<8x64x64xf32, #tpu.memory_space<vmem>>, vector<1x64x64xf32>
    %100 = vector.shape_cast %99 : vector<1x64x64xf32> to vector<64x64xf32>
    %101 = vector.broadcast %93 : vector<1x64xf32> to vector<64x64xf32>
    %102 = arith.mulf %100, %101 : vector<64x64xf32>
    %103 = arith.addf %92, %102 : vector<64x64xf32>
    %104 = vector.extract_strided_slice %9 {offsets = [5, 0], sizes = [1, 64], strides = [1, 1]} : vector<8x64xf32> to vector<1x64xf32>
    %c5_61 = arith.constant 5 : index
    %c0_62 = arith.constant 0 : index
    %c0_63 = arith.constant 0 : index
    %105 = vector.load %arg4[%c5_61, %c0_62, %c0_63] : memref<8x8x64xf32, #tpu.memory_space<vmem>>, vector<1x8x64xf32>
    %106 = vector.shape_cast %105 : vector<1x8x64xf32> to vector<8x64xf32>
    %107 = vector.broadcast %104 : vector<1x64xf32> to vector<8x64xf32>
    %108 = arith.mulf %106, %107 : vector<8x64xf32>
    %109 = arith.addf %98, %108 : vector<8x64xf32>
    %c5_64 = arith.constant 5 : index
    %c0_65 = arith.constant 0 : index
    %c0_66 = arith.constant 0 : index
    %110 = vector.load %arg3[%c5_64, %c0_65, %c0_66] : memref<8x64x64xf32, #tpu.memory_space<vmem>>, vector<1x64x64xf32>
    %111 = vector.shape_cast %110 : vector<1x64x64xf32> to vector<64x64xf32>
    %112 = vector.broadcast %104 : vector<1x64xf32> to vector<64x64xf32>
    %113 = arith.mulf %111, %112 : vector<64x64xf32>
    %114 = arith.addf %103, %113 : vector<64x64xf32>
    %115 = vector.extract_strided_slice %9 {offsets = [6, 0], sizes = [1, 64], strides = [1, 1]} : vector<8x64xf32> to vector<1x64xf32>
    %c6_67 = arith.constant 6 : index
    %c0_68 = arith.constant 0 : index
    %c0_69 = arith.constant 0 : index
    %116 = vector.load %arg4[%c6_67, %c0_68, %c0_69] : memref<8x8x64xf32, #tpu.memory_space<vmem>>, vector<1x8x64xf32>
    %117 = vector.shape_cast %116 : vector<1x8x64xf32> to vector<8x64xf32>
    %118 = vector.broadcast %115 : vector<1x64xf32> to vector<8x64xf32>
    %119 = arith.mulf %117, %118 : vector<8x64xf32>
    %120 = arith.addf %109, %119 : vector<8x64xf32>
    %c6_70 = arith.constant 6 : index
    %c0_71 = arith.constant 0 : index
    %c0_72 = arith.constant 0 : index
    %121 = vector.load %arg3[%c6_70, %c0_71, %c0_72] : memref<8x64x64xf32, #tpu.memory_space<vmem>>, vector<1x64x64xf32>
    %122 = vector.shape_cast %121 : vector<1x64x64xf32> to vector<64x64xf32>
    %123 = vector.broadcast %115 : vector<1x64xf32> to vector<64x64xf32>
    %124 = arith.mulf %122, %123 : vector<64x64xf32>
    %125 = arith.addf %114, %124 : vector<64x64xf32>
    %126 = vector.extract_strided_slice %9 {offsets = [7, 0], sizes = [1, 64], strides = [1, 1]} : vector<8x64xf32> to vector<1x64xf32>
    %c7_73 = arith.constant 7 : index
    %c0_74 = arith.constant 0 : index
    %c0_75 = arith.constant 0 : index
    %127 = vector.load %arg4[%c7_73, %c0_74, %c0_75] : memref<8x8x64xf32, #tpu.memory_space<vmem>>, vector<1x8x64xf32>
    %128 = vector.shape_cast %127 : vector<1x8x64xf32> to vector<8x64xf32>
    %129 = vector.broadcast %126 : vector<1x64xf32> to vector<8x64xf32>
    %130 = arith.mulf %128, %129 : vector<8x64xf32>
    %131 = arith.addf %120, %130 : vector<8x64xf32>
    %c7_76 = arith.constant 7 : index
    %c0_77 = arith.constant 0 : index
    %c0_78 = arith.constant 0 : index
    %132 = vector.load %arg3[%c7_76, %c0_77, %c0_78] : memref<8x64x64xf32, #tpu.memory_space<vmem>>, vector<1x64x64xf32>
    %133 = vector.shape_cast %132 : vector<1x64x64xf32> to vector<64x64xf32>
    %134 = vector.broadcast %126 : vector<1x64xf32> to vector<64x64xf32>
    %135 = arith.mulf %133, %134 : vector<64x64xf32>
    %136 = arith.addf %125, %135 : vector<64x64xf32>
    %137 = arith.addf %50, %131 : vector<8x64xf32>
    %c0_79 = arith.constant 0 : index
    %138 = arith.index_cast %6 : i32 to index
    %c0_80 = arith.constant 0 : index
    %139 = vector.load %arg8[%c0_79, %138, %c0_80] : memref<1x8x64xf32, #tpu.memory_space<vmem>>, vector<1x8x64xf32>
    %140 = vector.shape_cast %139 : vector<1x8x64xf32> to vector<8x64xf32>
    %141 = vector.shape_cast %137 : vector<8x64xf32> to vector<1x8x64xf32>
    tpu.vector_store %arg8[%c0_79, %138, %c0_80], %141 {strides = array<i32>} : memref<1x8x64xf32, #tpu.memory_space<vmem>>, vector<1x8x64xf32>,
    %142 = arith.mulf %3, %4 : vector<64x64xf32>
    %143 = arith.addf %142, %136 : vector<64x64xf32>
    %c1_i32 = arith.constant 1 : i32
    %c0_81 = arith.constant 0 : index
    %c0_82 = arith.constant 0 : index
    %144 = vector.load %arg9[%c0_81, %c0_82] : memref<64x64xf32, #tpu.memory_space<vmem>>, vector<64x64xf32>
    tpu.vector_store %arg9[%c0_81, %c0_82], %143 {strides = array<i32>} : memref<64x64xf32, #tpu.memory_space<vmem>>, vector<64x64xf32>,
    return
  }
  func.func @transform_0(%arg0: i32, %arg1: i32) -> (i32, i32, i32) {
    %c0_i32 = arith.constant 0 : i32
    %c0_i32_0 = arith.constant 0 : i32
    %c0_i32_1 = arith.constant 0 : i32
    %c0_i32_2 = arith.constant 0 : i32
    return %c0_i32, %c0_i32_0, %c0_i32_1 : i32, i32, i32
  }
  func.func @transform_1(%arg0: i32, %arg1: i32) -> (i32, i32, i32) {
    %c0_i32 = arith.constant 0 : i32
    %c0_i32_0 = arith.constant 0 : i32
    %c0_i32_1 = arith.constant 0 : i32
    %c0_i32_2 = arith.constant 0 : i32
    return %c0_i32, %c0_i32_0, %c0_i32_1 : i32, i32, i32
  }
  func.func @transform_2(%arg0: i32, %arg1: i32) -> (i32, i32, i32) {
    %c0_i32 = arith.constant 0 : i32
    %c0_i32_0 = arith.constant 0 : i32
    %c0_i32_1 = arith.constant 0 : i32
    %c0_i32_2 = arith.constant 0 : i32
    return %c0_i32, %c0_i32_0, %c0_i32_1 : i32, i32, i32
  }
  func.func @transform_3(%arg0: i32, %arg1: i32) -> (i32, i32) {
    %c0_i32 = arith.constant 0 : i32
    %c0_i32_0 = arith.constant 0 : i32
    %c0_i32_1 = arith.constant 0 : i32
    return %c0_i32, %c0_i32_0 : i32, i32
  }
  func.func @transform_4(%arg0: i32, %arg1: i32) -> (i32, i32) {
    %c0_i32 = arith.constant 0 : i32
    %c0_i32_0 = arith.constant 0 : i32
    %c0_i32_1 = arith.constant 0 : i32
    return %c0_i32, %c0_i32_0 : i32, i32
  }
  func.func @transform_5(%arg0: i32, %arg1: i32) -> (i32, i32, i32) {
    %c0_i32 = arith.constant 0 : i32
    %c0_i32_0 = arith.constant 0 : i32
    return %arg0, %arg1, %c0_i32 : i32, i32, i32
  }
  func.func @transform_6(%arg0: i32, %arg1: i32) -> (i32, i32, i32) {
    %c0_i32 = arith.constant 0 : i32
    %c0_i32_0 = arith.constant 0 : i32
    return %arg0, %arg1, %c0_i32 : i32, i32, i32
  }
}

</mosaic_0001>

<llo_original>
// kernel: s5_ssm_forward.1
$region0: #{s5_ssm_forward.1}
  #allocation0 [shape = 'u32[]', space=smem, size = 0x4, offset = 0x4, fixed_abs, tag = 'smem constant byte address 0x4 - core index']
  #allocation1 [shape = 'u32[144,128]{1,0:T(1,128)}', space=vmem, size = 0x12000, scoped, tag = 'internal scratch']
  #allocation2 [shape = 'f32[64,64]{1,0:T(8,128)}', space=vmem, size = 0x8000, scoped, tag = 'scratch operand']
  %s0 = inlined_call_operand.vmem [shape: f32[8,64,64], index: 0, kind: input, shape index: {}]
  %s1 = inlined_call_operand.vmem [shape: f32[8,64,64], index: 1, kind: input, shape index: {}]
  %s2 = inlined_call_operand.vmem [shape: f32[8,8,64], index: 2, kind: input, shape index: {}]
  %s3 = inlined_call_operand.vmem [shape: f32[64,64], index: 3, kind: input, shape index: {}]
  %s4 = inlined_call_operand.vmem [shape: f32[64,64], index: 4, kind: input, shape index: {}]
  %s5 = inlined_call_operand.vmem [shape: f32[1,16,64], index: 5, kind: input, shape index: {}]
  %s6 = inlined_call_operand.vmem [shape: f32[1,16,64], index: 6, kind: output, shape index: {}]
  %s7 = sld [smem:[#allocation0]]
  $region61: #{s5_ssm_forward.1} parent=0
    _
  %s9 = ssub.s32 1, %s7
  %s10 = scalar_select 0, %s9, %s7
  loop: start=0, step=1, limit=4
  $region2: #{s5_ssm_forward.1} parent=0 // loop_pre_header
    _
  $region3: #{s5_ssm_forward.1} parent=0 // loop_header
    %s12 = sphi 0, %s16
    %p13 = scmp.ge.s32.totalorder %s12, 4
    %s19 = sphi 0, %s31
    %s20 = sphi 0, %s27
    %s21 = sphi 0, %s19
    %s22 = sphi 0, %s20
    %s23 = sphi 0, %s21
    %s24 = sphi 0, %s22
    %s32 = sphi 0, %s32
    %s34 = sphi 0, %s32
    %s35 = sphi 0, %s34
    %s49 = sphi 0, %s35
    %s53 = sphi 0, %s53
    %s55 = sphi 0, %s53
    %s56 = sphi 0, %s55
    %s70 = sphi 0, %s56
    %s74 = sphi 0, %s74
    %s76 = sphi 0, %s74
    %s77 = sphi 0, %s76
    %s91 = sphi 0, %s77
    %s95 = sphi 0, %s95
    %s97 = sphi 0, %s95
    %s98 = sphi 0, %s97
    %s112 = sphi 0, %s98
    %s116 = sphi 0, %s116
    %s118 = sphi 0, %s116
    %s119 = sphi 0, %s118
    %s133 = sphi 0, %s119
    %s141 = sphi 0, %s143
    %s144 = sphi 0, %s141
    %s145 = sphi 0, %s144
    %s161 = sphi 0, %s145
    %s169 = sphi 0, %s171
    %s172 = sphi 0, %s169
    %s173 = sphi 0, %s172
    %s189 = sphi 0, %s173
  $region4: #{s5_ssm_forward.1} parent=0 // loop_header_branch
    %15 = sbr.rel (%p13) target = $region8
  $region5: #{s5_ssm_forward.1} parent=0 // loop_body
    %s17 = ssub.s32 %s12, 1
    %s18 = ssub.s32 %s12, 2
    %s25 = sadd.s32 1, %s20
    %p26 = scmp.ge.s32.totalorder %s25, 2
    %s27 = scalar_select %p26, 0, %s25
    %s28 = sadd.s32 1, %s19
    %s29 = scalar_select %p26, %s28, %s19
    %p30 = scmp.ge.s32.totalorder %s29, 1
    %s31 = scalar_select %p30, 0, %s29
    %s33 = sadd.s32 %s32, 1
    %p36 = scmp.eq.s32.totalorder %s12, 1
    %p37 = scmp.ne.s32.totalorder %s32, %s34
    %p38 = scmp.eq.s32.totalorder %s12, 0
    %p39 = por %p37, %p38
    %p40 = scmp.ne.s32.totalorder %s32, %s34
    %p41 = scmp.eq.s32.totalorder %s17, 1
    %p42 = por %p40, %p41
    %p43 = scmp.ne.s32.totalorder %s34, %s35
    %p44 = scmp.eq.s32.totalorder %s17, 0
    %p45 = por %p43, %p44
    %p46 = scmp.ne.s32.totalorder %s34, %s35
    %p47 = scmp.eq.s32.totalorder %s18, 1
    %p48 = por %p46, %p47
    %p50 = scmp.ne.s32.totalorder %s35, %s49
    %p51 = scmp.eq.s32.totalorder %s18, 0
    %p52 = por %p50, %p51
    %s54 = sadd.s32 %s53, 1
    %p57 = scmp.eq.s32.totalorder %s12, 1
    %p58 = scmp.ne.s32.totalorder %s53, %s55
    %p59 = scmp.eq.s32.totalorder %s12, 0
    %p60 = por %p58, %p59
    %p61 = scmp.ne.s32.totalorder %s53, %s55
    %p62 = scmp.eq.s32.totalorder %s17, 1
    %p63 = por %p61, %p62
    %p64 = scmp.ne.s32.totalorder %s55, %s56
    %p65 = scmp.eq.s32.totalorder %s17, 0
    %p66 = por %p64, %p65
    %p67 = scmp.ne.s32.totalorder %s55, %s56
    %p68 = scmp.eq.s32.totalorder %s18, 1
    %p69 = por %p67, %p68
    %p71 = scmp.ne.s32.totalorder %s56, %s70
    %p72 = scmp.eq.s32.totalorder %s18, 0
    %p73 = por %p71, %p72
    %s75 = sadd.s32 %s74, 1
    %p78 = scmp.eq.s32.totalorder %s12, 1
    %p79 = scmp.ne.s32.totalorder %s74, %s76
    %p80 = scmp.eq.s32.totalorder %s12, 0
    %p81 = por %p79, %p80
    %p82 = scmp.ne.s32.totalorder %s74, %s76
    %p83 = scmp.eq.s32.totalorder %s17, 1
    %p84 = por %p82, %p83
    %p85 = scmp.ne.s32.totalorder %s76, %s77
    %p86 = scmp.eq.s32.totalorder %s17, 0
    %p87 = por %p85, %p86
    %p88 = scmp.ne.s32.totalorder %s76, %s77
    %p89 = scmp.eq.s32.totalorder %s18, 1
    %p90 = por %p88, %p89
    %p92 = scmp.ne.s32.totalorder %s77, %s91
    %p93 = scmp.eq.s32.totalorder %s18, 0
    %p94 = por %p92, %p93
    %s96 = sadd.s32 %s95, 1
    %p99 = scmp.eq.s32.totalorder %s12, 1
    %p100 = scmp.ne.s32.totalorder %s95, %s97
    %p101 = scmp.eq.s32.totalorder %s12, 0
    %p102 = por %p100, %p101
    %p103 = scmp.ne.s32.totalorder %s95, %s97
    %p104 = scmp.eq.s32.totalorder %s17, 1
    %p105 = por %p103, %p104
    %p106 = scmp.ne.s32.totalorder %s97, %s98
    %p107 = scmp.eq.s32.totalorder %s17, 0
    %p108 = por %p106, %p107
    %p109 = scmp.ne.s32.totalorder %s97, %s98
    %p110 = scmp.eq.s32.totalorder %s18, 1
    %p111 = por %p109, %p110
    %p113 = scmp.ne.s32.totalorder %s98, %s112
    %p114 = scmp.eq.s32.totalorder %s18, 0
    %p115 = por %p113, %p114
    %s117 = sadd.s32 %s116, 1
    %p120 = scmp.eq.s32.totalorder %s12, 1
    %p121 = scmp.ne.s32.totalorder %s116, %s118
    %p122 = scmp.eq.s32.totalorder %s12, 0
    %p123 = por %p121, %p122
    %p124 = scmp.ne.s32.totalorder %s116, %s118
    %p125 = scmp.eq.s32.totalorder %s17, 1
    %p126 = por %p124, %p125
    %p127 = scmp.ne.s32.totalorder %s118, %s119
    %p128 = scmp.eq.s32.totalorder %s17, 0
    %p129 = por %p127, %p128
    %p130 = scmp.ne.s32.totalorder %s118, %s119
    %p131 = scmp.eq.s32.totalorder %s18, 1
    %p132 = por %p130, %p131
    %p134 = scmp.ne.s32.totalorder %s119, %s133
    %p135 = scmp.eq.s32.totalorder %s18, 0
    %p136 = por %p134, %p135
    %s137 = ssub.s32 %s19, %s31
    %s138 = ssub.s32 %s20, %s27
    %s139 = sor.u32 %s137, %s138
    %p140 = scmp.eq.s32.totalorder %s139, 0
    %s142 = sadd.s32 %s141, 1
    %s143 = scalar_select %p140, %s141, %s142
    %p146 = pneg %p140
    %p147 = scmp.eq.s32.totalorder %s12, 1
    %p148 = por %p146, %p147
    %p149 = scmp.ne.s32.totalorder %s141, %s144
    %p150 = scmp.eq.s32.totalorder %s12, 0
    %p151 = por %p149, %p150
    %p152 = scmp.ne.s32.totalorder %s141, %s144
    %p153 = scmp.eq.s32.totalorder %s17, 1
    %p154 = por %p152, %p153
    %p155 = scmp.ne.s32.totalorder %s144, %s145
    %p156 = scmp.eq.s32.totalorder %s17, 0
    %p157 = por %p155, %p156
    %p158 = scmp.ne.s32.totalorder %s144, %s145
    %p159 = scmp.eq.s32.totalorder %s18, 1
    %p160 = por %p158, %p159
    %p162 = scmp.ne.s32.totalorder %s145, %s161
    %p163 = scmp.eq.s32.totalorder %s18, 0
    %p164 = por %p162, %p163
    %s165 = ssub.s32 %s19, %s31
    %s166 = ssub.s32 %s20, %s27
    %s167 = sor.u32 %s165, %s166
    %p168 = scmp.eq.s32.totalorder %s167, 0
    %s170 = sadd.s32 %s169, 1
    %s171 = scalar_select %p168, %s169, %s170
    %p174 = pneg %p168
    %p175 = scmp.eq.s32.totalorder %s12, 1
    %p176 = por %p174, %p175
    %p177 = scmp.ne.s32.totalorder %s169, %s172
    %p178 = scmp.eq.s32.totalorder %s12, 0
    %p179 = por %p177, %p178
    %p180 = scmp.ne.s32.totalorder %s169, %s172
    %p181 = scmp.eq.s32.totalorder %s17, 1
    %p182 = por %p180, %p181
    %p183 = scmp.ne.s32.totalorder %s172, %s173
    %p184 = scmp.eq.s32.totalorder %s17, 0
    %p185 = por %p183, %p184
    %p186 = scmp.ne.s32.totalorder %s172, %s173
    %p187 = scmp.eq.s32.totalorder %s18, 1
    %p188 = por %p186, %p187
    %p190 = scmp.ne.s32.totalorder %s173, %s189
    %p191 = scmp.eq.s32.totalorder %s18, 0
    %p192 = por %p190, %p191
    %p193 = scmp.le.s32.totalorder 1, %s12
    %p194 = scmp.lt.s32.totalorder %s12, 3
    %p195 = pnand %p193, %p194
    %p196 = pneg %p195
    // Predicated region
    $region9: #{s5_ssm_forward.1} parent=5 // pred_check
      _
    $region10: #{s5_ssm_forward.1} parent=5 // pred_check_branch
      %198 = sbr.rel (%p195) target = $region12
    $region11: #{s5_ssm_forward.1} parent=5 // pred_region
      %s199 = ssub.s32 %s12, 1
      // Predicated region
      $region13: #{s5_ssm_forward.1} parent=11 // pred_check
        %p200 = pneg %p45
      $region14: #{s5_ssm_forward.1} parent=11 // pred_check_branch
        %202 = sbr.rel (%p200) target = $region16
      $region15: #{s5_ssm_forward.1} parent=11 // pred_region
        _
      $region16: #{s5_ssm_forward.1} parent=11 // pred_fallthru
        _
      // Predicated region
      $region17: #{s5_ssm_forward.1} parent=11 // pred_check
        %p203 = pneg %p66
      $region18: #{s5_ssm_forward.1} parent=11 // pred_check_branch
        %205 = sbr.rel (%p203) target = $region20
      $region19: #{s5_ssm_forward.1} parent=11 // pred_region
        _
      $region20: #{s5_ssm_forward.1} parent=11 // pred_fallthru
        _
      // Predicated region
      $region21: #{s5_ssm_forward.1} parent=11 // pred_check
        %p206 = pneg %p87
      $region22: #{s5_ssm_forward.1} parent=11 // pred_check_branch
        %208 = sbr.rel (%p206) target = $region24
      $region23: #{s5_ssm_forward.1} parent=11 // pred_region
        _
      $region24: #{s5_ssm_forward.1} parent=11 // pred_fallthru
        _
      // Predicated region
      $region25: #{s5_ssm_forward.1} parent=11 // pred_check
        %p209 = pneg %p108
      $region26: #{s5_ssm_forward.1} parent=11 // pred_check_branch
        %211 = sbr.rel (%p209) target = $region28
      $region27: #{s5_ssm_forward.1} parent=11 // pred_region
        _
      $region28: #{s5_ssm_forward.1} parent=11 // pred_fallthru
        _
      // Predicated region
      $region29: #{s5_ssm_forward.1} parent=11 // pred_check
        %p212 = pneg %p129
      $region30: #{s5_ssm_forward.1} parent=11 // pred_check_branch
        %214 = sbr.rel (%p212) target = $region32
      $region31: #{s5_ssm_forward.1} parent=11 // pred_region
        _
      $region32: #{s5_ssm_forward.1} parent=11 // pred_fallthru
        _
    $region12: #{s5_ssm_forward.1} parent=5 // pred_fallthru
      _
    %p215 = scmp.lt.s32.totalorder %s12, 2
    // Predicated region
    $region33: #{s5_ssm_forward.1} parent=5 // pred_check
      %p216 = pneg %p215
    $region34: #{s5_ssm_forward.1} parent=5 // pred_check_branch
      %218 = sbr.rel (%p216) target = $region36
    $region35: #{s5_ssm_forward.1} parent=5 // pred_region
      // Predicated region
      $region37: #{s5_ssm_forward.1} parent=35 // pred_check
        %p219 = pneg %p151
      $region38: #{s5_ssm_forward.1} parent=35 // pred_check_branch
        %221 = sbr.rel (%p219) target = $region40
      $region39: #{s5_ssm_forward.1} parent=35 // pred_region
        %p222 = scmp.lt.s32.totalorder %s19, 0
        %s223 = scalar_select %p222, %s19, 0
        %p224 = scmp.lt.s32.totalorder %s20, 1
        %s225 = scalar_select %p224, %s20, 1
        %s226 = smul.addr %s223, 2
        %s227 = sadd.s32 %s225, %s226
        %s228 = smul.addr %s227, 8
        %s229 = scalar_lea.vmem %s5, %s228
      $region40: #{s5_ssm_forward.1} parent=35 // pred_fallthru
        _
    $region36: #{s5_ssm_forward.1} parent=5 // pred_fallthru
      _
    %p230 = scmp.le.s32.totalorder 1, %s12
    %p231 = scmp.lt.s32.totalorder %s12, 3
    %p232 = pnand %p230, %p231
    %p233 = pneg %p232
    // Predicated region
    $region41: #{s5_ssm_forward.1} parent=5 // pred_check
      _
    $region42: #{s5_ssm_forward.1} parent=5 // pred_check_branch
      %235 = sbr.rel (%p232) target = $region44
    $region43: #{s5_ssm_forward.1} parent=5 // pred_region
      %s236 = ssub.s32 %s12, 1
      %p237 = pneg %p45
      %p238 = pneg %p42
      %p239 = pneg %p66
      %p240 = pneg %p63
      %p241 = pneg %p87
      %p242 = pneg %p84
      %p243 = pneg %p108
      %p244 = pneg %p105
      %p245 = pneg %p129
      %p246 = pneg %p126
      %p247 = scmp.lt.s32.totalorder %s21, 0
      %s248 = scalar_select %p247, %s21, 0
      %p249 = scmp.lt.s32.totalorder %s22, 1
      %s250 = scalar_select %p249, %s22, 1
      %s251 = smul.addr %s248, 2
      %s252 = sadd.s32 %s250, %s251
      %s253 = smul.addr %s252, 8
      %s254 = scalar_lea.vmem %s5, %s253
      %p255 = pneg %p157
      %p256 = pneg %p154
      %p257 = pneg %p185
      %p258 = pneg %p182
      %p259 = scmp.lt.s32.totalorder %s21, 0
      %s260 = scalar_select %p259, %s21, 0
      %p261 = scmp.lt.s32.totalorder %s22, 1
      %s262 = scalar_select %p261, %s22, 1
      %s263 = smul.addr %s260, 2
      %s264 = sadd.s32 %s262, %s263
      %s265 = smul.addr %s264, 8
      %s266 = scalar_lea.vmem %s6, %s265
      %p267 = scmp.lt.s32.totalorder %s21, 0
      %s268 = scalar_select %p267, %s21, 0
      %p269 = scmp.lt.s32.totalorder %s22, 1
      %s270 = scalar_select %p269, %s22, 1
      %s271 = smul.addr %s268, 2
      %s272 = sadd.s32 %s270, %s271
      %s273 = smul.addr %s272, 8
      %s274 = scalar_lea.vmem %s5, %s273
      %p275 = scmp.lt.s32.totalorder %s21, 0
      %s276 = scalar_select %p275, %s21, 0
      %p277 = scmp.lt.s32.totalorder %s22, 1
      %s278 = scalar_select %p277, %s22, 1
      %s279 = smul.addr %s276, 2
      %s280 = sadd.s32 %s278, %s279
      %s281 = smul.addr %s280, 8
      %s282 = scalar_lea.vmem %s6, %s281
      %p283 = scmp.eq.s32.totalorder %s22, 0
      // Predicated region
      $region45: #{s5_ssm_forward.1} parent=43 // pred_check
        %p284 = pneg %p283
      $region46: #{s5_ssm_forward.1} parent=43 // pred_check_branch
        %286 = sbr.rel (%p284) target = $region48
      $region47: #{s5_ssm_forward.1} parent=43 // pred_region
        %v287 = vld [vmem:[%s4] sm:$0xff]
        %v288 = vld [vmem:[%s4 + $0x8] sm:$0xff]
        %v289 = vld [vmem:[%s4 + $0x10] sm:$0xff]
        %v290 = vld [vmem:[%s4 + $0x18] sm:$0xff]
        %v291 = vld [vmem:[%s4 + $0x20] sm:$0xff]
        %v292 = vld [vmem:[%s4 + $0x28] sm:$0xff]
        %v293 = vld [vmem:[%s4 + $0x30] sm:$0xff]
        %v294 = vld [vmem:[%s4 + $0x38] sm:$0xff]
        %vm295 = vcmask 523264
        %296 = vst.msk [vmem:[#allocation2] sm:$0xff] %vm295, %v287
        %297 = vst.msk [vmem:[#allocation2 + $0x8] sm:$0xff] %vm295, %v288
        %298 = vst.msk [vmem:[#allocation2 + $0x10] sm:$0xff] %vm295, %v289
        %299 = vst.msk [vmem:[#allocation2 + $0x18] sm:$0xff] %vm295, %v290
        %300 = vst.msk [vmem:[#allocation2 + $0x20] sm:$0xff] %vm295, %v291
        %301 = vst.msk [vmem:[#allocation2 + $0x28] sm:$0xff] %vm295, %v292
        %302 = vst.msk [vmem:[#allocation2 + $0x30] sm:$0xff] %vm295, %v293
        %303 = vst.msk [vmem:[#allocation2 + $0x38] sm:$0xff] %vm295, %v294
      $region48: #{s5_ssm_forward.1} parent=43 // pred_fallthru
        _
      %v304 = vld [vmem:[%s3] sm:$0xff]
      %v305 = vld [vmem:[%s3 + $0x8] sm:$0xff]
      %v306 = vld [vmem:[%s3 + $0x10] sm:$0xff]
      %v307 = vld [vmem:[%s3 + $0x18] sm:$0xff]
      %v308 = vld [vmem:[%s3 + $0x20] sm:$0xff]
      %v309 = vld [vmem:[%s3 + $0x28] sm:$0xff]
      %v310 = vld [vmem:[%s3 + $0x30] sm:$0xff]
      %v311 = vld [vmem:[%s3 + $0x38] sm:$0xff]
      %v312 = vld [vmem:[#allocation2] sm:$0xff]
      %v313 = vld [vmem:[#allocation2 + $0x8] sm:$0xff]
      %v314 = vld [vmem:[#allocation2 + $0x10] sm:$0xff]
      %v315 = vld [vmem:[#allocation2 + $0x18] sm:$0xff]
      %v316 = vld [vmem:[#allocation2 + $0x20] sm:$0xff]
      %v317 = vld [vmem:[#allocation2 + $0x28] sm:$0xff]
      %v318 = vld [vmem:[#allocation2 + $0x30] sm:$0xff]
      %v319 = vld [vmem:[#allocation2 + $0x38] sm:$0xff]
      %v320 = vld [vmem:[%s274] sm:$0xff]
      %v321 = vld [vmem:[%s0] sm:$0xff]
      %v322 = vld [vmem:[%s0 + $0x8] sm:$0xff]
      %v323 = vld [vmem:[%s0 + $0x10] sm:$0xff]
      %v324 = vld [vmem:[%s0 + $0x18] sm:$0xff]
      %v325 = vld [vmem:[%s0 + $0x20] sm:$0xff]
      %v326 = vld [vmem:[%s0 + $0x28] sm:$0xff]
      %v327 = vld [vmem:[%s0 + $0x30] sm:$0xff]
      %v328 = vld [vmem:[%s0 + $0x38] sm:$0xff]
      %v329 = vmul.f32 %v321, %v312
      %v330 = vmul.f32 %v322, %v313
      %v331 = vmul.f32 %v323, %v314
      %v332 = vmul.f32 %v324, %v315
      %v333 = vmul.f32 %v325, %v316
      %v334 = vmul.f32 %v326, %v317
      %v335 = vmul.f32 %v327, %v318
      %v336 = vmul.f32 %v328, %v319
      %vm337 = vcmask 523264
      %v338 = vsel %vm337, %v329, 0.0
      %v339 = vsel %vm337, %v330, 0.0
      %v340 = vadd.f32 %v338, %v339
      %v341 = vsel %vm337, %v331, 0.0
      %v342 = vadd.f32 %v340, %v341
      %v343 = vsel %vm337, %v332, 0.0
      %v344 = vadd.f32 %v342, %v343
      %v345 = vsel %vm337, %v333, 0.0
      %v346 = vadd.f32 %v344, %v345
      %v347 = vsel %vm337, %v334, 0.0
      %v348 = vadd.f32 %v346, %v347
      %v349 = vsel %vm337, %v335, 0.0
      %v350 = vadd.f32 %v348, %v349
      %v351 = vsel %vm337, %v336, 0.0
      %v352 = vadd.f32 %v350, %v351
      %v353 = vrot.slane %v352, 4
      %v354 = vadd.f32 %v352, %v353
      %v355 = vrot.slane %v354, 2
      %v356 = vadd.f32 %v354, %v355
      %v357 = vrot.slane %v356, 1
      %v358 = vadd.f32 %v356, %v357
      %s359 = scalar_lea.vmem %s0, 64
      %v360 = vld [vmem:[%s359] sm:$0xff]
      %v361 = vld [vmem:[%s359 + $0x8] sm:$0xff]
      %v362 = vld [vmem:[%s359 + $0x10] sm:$0xff]
      %v363 = vld [vmem:[%s359 + $0x18] sm:$0xff]
      %v364 = vld [vmem:[%s359 + $0x20] sm:$0xff]
      %v365 = vld [vmem:[%s359 + $0x28] sm:$0xff]
      %v366 = vld [vmem:[%s359 + $0x30] sm:$0xff]
      %v367 = vld [vmem:[%s359 + $0x38] sm:$0xff]
      %v368 = vmul.f32 %v360, %v312
      %v369 = vmul.f32 %v361, %v313
      %v370 = vmul.f32 %v362, %v314
      %v371 = vmul.f32 %v363, %v315
      %v372 = vmul.f32 %v364, %v316
      %v373 = vmul.f32 %v365, %v317
      %v374 = vmul.f32 %v366, %v318
      %v375 = vmul.f32 %v367, %v319
      %v376 = vsel %vm337, %v368, 0.0
      %v377 = vsel %vm337, %v369, 0.0
      %v378 = vadd.f32 %v376, %v377
      %v379 = vsel %vm337, %v370, 0.0
      %v380 = vadd.f32 %v378, %v379
      %v381 = vsel %vm337, %v371, 0.0
      %v382 = vadd.f32 %v380, %v381
      %v383 = vsel %vm337, %v372, 0.0
      %v384 = vadd.f32 %v382, %v383
      %v385 = vsel %vm337, %v373, 0.0
      %v386 = vadd.f32 %v384, %v385
      %v387 = vsel %vm337, %v374, 0.0
      %v388 = vadd.f32 %v386, %v387
      %v389 = vsel %vm337, %v375, 0.0
      %v390 = vadd.f32 %v388, %v389
      %v391 = vrot.slane %v390, 4
      %v392 = vadd.f32 %v390, %v391
      %v393 = vrot.slane %v392, 2
      %v394 = vadd.f32 %v392, %v393
      %v395 = vrot.slane %v394, 1
      %v396 = vadd.f32 %v394, %v395
      %s397 = scalar_lea.vmem %s0, 128
      %v398 = vld [vmem:[%s397] sm:$0xff]
      %v399 = vld [vmem:[%s397 + $0x8] sm:$0xff]
      %v400 = vld [vmem:[%s397 + $0x10] sm:$0xff]
      %v401 = vld [vmem:[%s397 + $0x18] sm:$0xff]
      %v402 = vld [vmem:[%s397 + $0x20] sm:$0xff]
      %v403 = vld [vmem:[%s397 + $0x28] sm:$0xff]
      %v404 = vld [vmem:[%s397 + $0x30] sm:$0xff]
      %v405 = vld [vmem:[%s397 + $0x38] sm:$0xff]
      %v406 = vmul.f32 %v398, %v312
      %v407 = vmul.f32 %v399, %v313
      %v408 = vmul.f32 %v400, %v314
      %v409 = vmul.f32 %v401, %v315
      %v410 = vmul.f32 %v402, %v316
      %v411 = vmul.f32 %v403, %v317
      %v412 = vmul.f32 %v404, %v318
      %v413 = vmul.f32 %v405, %v319
      %v414 = vsel %vm337, %v406, 0.0
      %v415 = vsel %vm337, %v407, 0.0
      %v416 = vadd.f32 %v414, %v415
      %v417 = vsel %vm337, %v408, 0.0
      %v418 = vadd.f32 %v416, %v417
      %v419 = vsel %vm337, %v409, 0.0
      %v420 = vadd.f32 %v418, %v419
      %v421 = vsel %vm337, %v410, 0.0
      %v422 = vadd.f32 %v420, %v421
      %v423 = vsel %vm337, %v411, 0.0
      %v424 = vadd.f32 %v422, %v423
      %v425 = vsel %vm337, %v412, 0.0
      %v426 = vadd.f32 %v424, %v425
      %v427 = vsel %vm337, %v413, 0.0
      %v428 = vadd.f32 %v426, %v427
      %v429 = vrot.slane %v428, 4
      %v430 = vadd.f32 %v428, %v429
      %v431 = vrot.slane %v430, 2
      %v432 = vadd.f32 %v430, %v431
      %v433 = vrot.slane %v432, 1
      %v434 = vadd.f32 %v432, %v433
      %s435 = scalar_lea.vmem %s0, 192
      %v436 = vld [vmem:[%s435] sm:$0xff]
      %v437 = vld [vmem:[%s435 + $0x8] sm:$0xff]
      %v438 = vld [vmem:[%s435 + $0x10] sm:$0xff]
      %v439 = vld [vmem:[%s435 + $0x18] sm:$0xff]
      %v440 = vld [vmem:[%s435 + $0x20] sm:$0xff]
      %v441 = vld [vmem:[%s435 + $0x28] sm:$0xff]
      %v442 = vld [vmem:[%s435 + $0x30] sm:$0xff]
      %v443 = vld [vmem:[%s435 + $0x38] sm:$0xff]
      %v444 = vmul.f32 %v436, %v312
      %v445 = vmul.f32 %v437, %v313
      %v446 = vmul.f32 %v438, %v314
      %v447 = vmul.f32 %v439, %v315
      %v448 = vmul.f32 %v440, %v316
      %v449 = vmul.f32 %v441, %v317
      %v450 = vmul.f32 %v442, %v318
      %v451 = vmul.f32 %v443, %v319
      %v452 = vsel %vm337, %v444, 0.0
      %v453 = vsel %vm337, %v445, 0.0
      %v454 = vadd.f32 %v452, %v453
      %v455 = vsel %vm337, %v446, 0.0
      %v456 = vadd.f32 %v454, %v455
      %v457 = vsel %vm337, %v447, 0.0
      %v458 = vadd.f32 %v456, %v457
      %v459 = vsel %vm337, %v448, 0.0
      %v460 = vadd.f32 %v458, %v459
      %v461 = vsel %vm337, %v449, 0.0
      %v462 = vadd.f32 %v460, %v461
      %v463 = vsel %vm337, %v450, 0.0
      %v464 = vadd.f32 %v462, %v463
      %v465 = vsel %vm337, %v451, 0.0
      %v466 = vadd.f32 %v464, %v465
      %v467 = vrot.slane %v466, 4
      %v468 = vadd.f32 %v466, %v467
      %v469 = vrot.slane %v468, 2
      %v470 = vadd.f32 %v468, %v469
      %v471 = vrot.slane %v470, 1
      %v472 = vadd.f32 %v470, %v471
      %s473 = scalar_lea.vmem %s0, 256
      %v474 = vld [vmem:[%s473] sm:$0xff]
      %v475 = vld [vmem:[%s473 + $0x8] sm:$0xff]
      %v476 = vld [vmem:[%s473 + $0x10] sm:$0xff]
      %v477 = vld [vmem:[%s473 + $0x18] sm:$0xff]
      %v478 = vld [vmem:[%s473 + $0x20] sm:$0xff]
      %v479 = vld [vmem:[%s473 + $0x28] sm:$0xff]
      %v480 = vld [vmem:[%s473 + $0x30] sm:$0xff]
      %v481 = vld [vmem:[%s473 + $0x38] sm:$0xff]
      %v482 = vmul.f32 %v474, %v312
      %v483 = vmul.f32 %v475, %v313
      %v484 = vmul.f32 %v476, %v314
      %v485 = vmul.f32 %v477, %v315
      %v486 = vmul.f32 %v478, %v316
      %v487 = vmul.f32 %v479, %v317
      %v488 = vmul.f32 %v480, %v318
      %v489 = vmul.f32 %v481, %v319
      %v490 = vsel %vm337, %v482, 0.0
      %v491 = vsel %vm337, %v483, 0.0
      %v492 = vadd.f32 %v490, %v491
      %v493 = vsel %vm337, %v484, 0.0
      %v494 = vadd.f32 %v492, %v493
      %v495 = vsel %vm337, %v485, 0.0
      %v496 = vadd.f32 %v494, %v495
      %v497 = vsel %vm337, %v486, 0.0
      %v498 = vadd.f32 %v496, %v497
      %v499 = vsel %vm337, %v487, 0.0
      %v500 = vadd.f32 %v498, %v499
      %v501 = vsel %vm337, %v488, 0.0
      %v502 = vadd.f32 %v500, %v501
      %v503 = vsel %vm337, %v489, 0.0
      %v504 = vadd.f32 %v502, %v503
      %v505 = vrot.slane %v504, 4
      %v506 = vadd.f32 %v504, %v505
      %v507 = vrot.slane %v506, 2
      %v508 = vadd.f32 %v506, %v507
      %v509 = vrot.slane %v508, 1
      %v510 = vadd.f32 %v508, %v509
      %s511 = scalar_lea.vmem %s0, 320
      %v512 = vld [vmem:[%s511] sm:$0xff]
      %v513 = vld [vmem:[%s511 + $0x8] sm:$0xff]
      %v514 = vld [vmem:[%s511 + $0x10] sm:$0xff]
      %v515 = vld [vmem:[%s511 + $0x18] sm:$0xff]
      %v516 = vld [vmem:[%s511 + $0x20] sm:$0xff]
      %v517 = vld [vmem:[%s511 + $0x28] sm:$0xff]
      %v518 = vld [vmem:[%s511 + $0x30] sm:$0xff]
      %v519 = vld [vmem:[%s511 + $0x38] sm:$0xff]
      %v520 = vmul.f32 %v512, %v312
      %v521 = vmul.f32 %v513, %v313
      %v522 = vmul.f32 %v514, %v314
      %v523 = vmul.f32 %v515, %v315
      %v524 = vmul.f32 %v516, %v316
      %v525 = vmul.f32 %v517, %v317
      %v526 = vmul.f32 %v518, %v318
      %v527 = vmul.f32 %v519, %v319
      %v528 = vsel %vm337, %v520, 0.0
      %v529 = vsel %vm337, %v521, 0.0
      %v530 = vadd.f32 %v528, %v529
      %v531 = vsel %vm337, %v522, 0.0
      %v532 = vadd.f32 %v530, %v531
      %v533 = vsel %vm337, %v523, 0.0
      %v534 = vadd.f32 %v532, %v533
      %v535 = vsel %vm337, %v524, 0.0
      %v536 = vadd.f32 %v534, %v535
      %v537 = vsel %vm337, %v525, 0.0
      %v538 = vadd.f32 %v536, %v537
      %v539 = vsel %vm337, %v526, 0.0
      %v540 = vadd.f32 %v538, %v539
      %v541 = vsel %vm337, %v527, 0.0
      %v542 = vadd.f32 %v540, %v541
      %v543 = vrot.slane %v542, 4
      %v544 = vadd.f32 %v542, %v543
      %v545 = vrot.slane %v544, 2
      %v546 = vadd.f32 %v544, %v545
      %v547 = vrot.slane %v546, 1
      %v548 = vadd.f32 %v546, %v547
      %s549 = scalar_lea.vmem %s0, 384
      %v550 = vld [vmem:[%s549] sm:$0xff]
      %v551 = vld [vmem:[%s549 + $0x8] sm:$0xff]
      %v552 = vld [vmem:[%s549 + $0x10] sm:$0xff]
      %v553 = vld [vmem:[%s549 + $0x18] sm:$0xff]
      %v554 = vld [vmem:[%s549 + $0x20] sm:$0xff]
      %v555 = vld [vmem:[%s549 + $0x28] sm:$0xff]
      %v556 = vld [vmem:[%s549 + $0x30] sm:$0xff]
      %v557 = vld [vmem:[%s549 + $0x38] sm:$0xff]
      %v558 = vmul.f32 %v550, %v312
      %v559 = vmul.f32 %v551, %v313
      %v560 = vmul.f32 %v552, %v314
      %v561 = vmul.f32 %v553, %v315
      %v562 = vmul.f32 %v554, %v316
      %v563 = vmul.f32 %v555, %v317
      %v564 = vmul.f32 %v556, %v318
      %v565 = vmul.f32 %v557, %v319
      %v566 = vsel %vm337, %v558, 0.0
      %v567 = vsel %vm337, %v559, 0.0
      %v568 = vadd.f32 %v566, %v567
      %v569 = vsel %vm337, %v560, 0.0
      %v570 = vadd.f32 %v568, %v569
      %v571 = vsel %vm337, %v561, 0.0
      %v572 = vadd.f32 %v570, %v571
      %v573 = vsel %vm337, %v562, 0.0
      %v574 = vadd.f32 %v572, %v573
      %v575 = vsel %vm337, %v563, 0.0
      %v576 = vadd.f32 %v574, %v575
      %v577 = vsel %vm337, %v564, 0.0
      %v578 = vadd.f32 %v576, %v577
      %v579 = vsel %vm337, %v565, 0.0
      %v580 = vadd.f32 %v578, %v579
      %v581 = vrot.slane %v580, 4
      %v582 = vadd.f32 %v580, %v581
      %v583 = vrot.slane %v582, 2
      %v584 = vadd.f32 %v582, %v583
      %v585 = vrot.slane %v584, 1
      %v586 = vadd.f32 %v584, %v585
      %s587 = scalar_lea.vmem %s0, 448
      %v588 = vld [vmem:[%s587] sm:$0xff]
      %v589 = vld [vmem:[%s587 + $0x8] sm:$0xff]
      %v590 = vld [vmem:[%s587 + $0x10] sm:$0xff]
      %v591 = vld [vmem:[%s587 + $0x18] sm:$0xff]
      %v592 = vld [vmem:[%s587 + $0x20] sm:$0xff]
      %v593 = vld [vmem:[%s587 + $0x28] sm:$0xff]
      %v594 = vld [vmem:[%s587 + $0x30] sm:$0xff]
      %v595 = vld [vmem:[%s587 + $0x38] sm:$0xff]
      %v596 = vmul.f32 %v588, %v312
      %v597 = vmul.f32 %v589, %v313
      %v598 = vmul.f32 %v590, %v314
      %v599 = vmul.f32 %v591, %v315
      %v600 = vmul.f32 %v592, %v316
      %v601 = vmul.f32 %v593, %v317
      %v602 = vmul.f32 %v594, %v318
      %v603 = vmul.f32 %v595, %v319
      %v604 = vsel %vm337, %v596, 0.0
      %v605 = vsel %vm337, %v597, 0.0
      %v606 = vadd.f32 %v604, %v605
      %v607 = vsel %vm337, %v598, 0.0
      %v608 = vadd.f32 %v606, %v607
      %v609 = vsel %vm337, %v599, 0.0
      %v610 = vadd.f32 %v608, %v609
      %v611 = vsel %vm337, %v600, 0.0
      %v612 = vadd.f32 %v610, %v611
      %v613 = vsel %vm337, %v601, 0.0
      %v614 = vadd.f32 %v612, %v613
      %v615 = vsel %vm337, %v602, 0.0
      %v616 = vadd.f32 %v614, %v615
      %v617 = vsel %vm337, %v603, 0.0
      %v618 = vadd.f32 %v616, %v617
      %v619 = vrot.slane %v618, 4
      %v620 = vadd.f32 %v618, %v619
      %v621 = vrot.slane %v620, 2
      %v622 = vadd.f32 %v620, %v621
      %v623 = vrot.slane %v622, 1
      %v624 = vadd.f32 %v622, %v623
      %vm625 = vcmask 1040384
      %v626 = vsel %vm625, %v358, %v396
      %vm627 = vcmask 1041408
      %v628 = vsel %vm627, %v626, %v434
      %vm629 = vcmask 1042432
      %v630 = vsel %vm629, %v628, %v472
      %vm631 = vcmask 1043456
      %v632 = vsel %vm631, %v630, %v510
      %vm633 = vcmask 1044480
      %v634 = vsel %vm633, %v632, %v548
      %vm635 = vcmask 1045504
      %v636 = vsel %vm635, %v634, %v586
      %vm637 = vcmask 1046528
      %v638 = vsel %vm637, %v636, %v624
      %v639 = vld [vmem:[%s2] sm:$0xff]
      %v640 = vlaneseq
      %v641 = vshrl.u32 %v640, 7
      %v642 = vsub.s32 0, %v641
      %v643 = vrot.slane %v320, %v642
      %v644 = vmul.f32 %v639, %v643
      %v645 = vld [vmem:[%s1] sm:$0xff]
      %v646 = vld [vmem:[%s1 + $0x8] sm:$0xff]
      %v647 = vld [vmem:[%s1 + $0x10] sm:$0xff]
      %v648 = vld [vmem:[%s1 + $0x18] sm:$0xff]
      %v649 = vld [vmem:[%s1 + $0x20] sm:$0xff]
      %v650 = vld [vmem:[%s1 + $0x28] sm:$0xff]
      %v651 = vld [vmem:[%s1 + $0x30] sm:$0xff]
      %v652 = vld [vmem:[%s1 + $0x38] sm:$0xff]
      %v653 = vmul.f32 %v645, %v643
      %v654 = vmul.f32 %v646, %v643
      %v655 = vmul.f32 %v647, %v643
      %v656 = vmul.f32 %v648, %v643
      %v657 = vmul.f32 %v649, %v643
      %v658 = vmul.f32 %v650, %v643
      %v659 = vmul.f32 %v651, %v643
      %v660 = vmul.f32 %v652, %v643
      %s661 = scalar_lea.vmem %s2, 8
      %v662 = vld [vmem:[%s661] sm:$0xff]
      %v663 = vlaneseq
      %v664 = vshrl.u32 %v663, 7
      %v665 = vsub.s32 1, %v664
      %v666 = vrot.slane %v320, %v665
      %v667 = vmul.f32 %v662, %v666
      %v668 = vadd.f32 %v644, %v667
      %s669 = scalar_lea.vmem %s1, 64
      %v670 = vld [vmem:[%s669] sm:$0xff]
      %v671 = vld [vmem:[%s669 + $0x8] sm:$0xff]
      %v672 = vld [vmem:[%s669 + $0x10] sm:$0xff]
      %v673 = vld [vmem:[%s669 + $0x18] sm:$0xff]
      %v674 = vld [vmem:[%s669 + $0x20] sm:$0xff]
      %v675 = vld [vmem:[%s669 + $0x28] sm:$0xff]
      %v676 = vld [vmem:[%s669 + $0x30] sm:$0xff]
      %v677 = vld [vmem:[%s669 + $0x38] sm:$0xff]
      %v678 = vmul.f32 %v670, %v666
      %v679 = vmul.f32 %v671, %v666
      %v680 = vmul.f32 %v672, %v666
      %v681 = vmul.f32 %v673, %v666
      %v682 = vmul.f32 %v674, %v666
      %v683 = vmul.f32 %v675, %v666
      %v684 = vmul.f32 %v676, %v666
      %v685 = vmul.f32 %v677, %v666
      %v686 = vadd.f32 %v653, %v678
      %v687 = vadd.f32 %v654, %v679
      %v688 = vadd.f32 %v655, %v680
      %v689 = vadd.f32 %v656, %v681
      %v690 = vadd.f32 %v657, %v682
      %v691 = vadd.f32 %v658, %v683
      %v692 = vadd.f32 %v659, %v684
      %v693 = vadd.f32 %v660, %v685
      %s694 = scalar_lea.vmem %s2, 16
      %v695 = vld [vmem:[%s694] sm:$0xff]
      %v696 = vlaneseq
      %v697 = vshrl.u32 %v696, 7
      %v698 = vsub.s32 2, %v697
      %v699 = vrot.slane %v320, %v698
      %v700 = vmul.f32 %v695, %v699
      %v701 = vadd.f32 %v668, %v700
      %s702 = scalar_lea.vmem %s1, 128
      %v703 = vld [vmem:[%s702] sm:$0xff]
      %v704 = vld [vmem:[%s702 + $0x8] sm:$0xff]
      %v705 = vld [vmem:[%s702 + $0x10] sm:$0xff]
      %v706 = vld [vmem:[%s702 + $0x18] sm:$0xff]
      %v707 = vld [vmem:[%s702 + $0x20] sm:$0xff]
      %v708 = vld [vmem:[%s702 + $0x28] sm:$0xff]
      %v709 = vld [vmem:[%s702 + $0x30] sm:$0xff]
      %v710 = vld [vmem:[%s702 + $0x38] sm:$0xff]
      %v711 = vmul.f32 %v703, %v699
      %v712 = vmul.f32 %v704, %v699
      %v713 = vmul.f32 %v705, %v699
      %v714 = vmul.f32 %v706, %v699
      %v715 = vmul.f32 %v707, %v699
      %v716 = vmul.f32 %v708, %v699
      %v717 = vmul.f32 %v709, %v699
      %v718 = vmul.f32 %v710, %v699
      %v719 = vadd.f32 %v686, %v711
      %v720 = vadd.f32 %v687, %v712
      %v721 = vadd.f32 %v688, %v713
      %v722 = vadd.f32 %v689, %v714
      %v723 = vadd.f32 %v690, %v715
      %v724 = vadd.f32 %v691, %v716
      %v725 = vadd.f32 %v692, %v717
      %v726 = vadd.f32 %v693, %v718
      %s727 = scalar_lea.vmem %s2, 24
      %v728 = vld [vmem:[%s727] sm:$0xff]
      %v729 = vlaneseq
      %v730 = vshrl.u32 %v729, 7
      %v731 = vsub.s32 3, %v730
      %v732 = vrot.slane %v320, %v731
      %v733 = vmul.f32 %v728, %v732
      %v734 = vadd.f32 %v701, %v733
      %s735 = scalar_lea.vmem %s1, 192
      %v736 = vld [vmem:[%s735] sm:$0xff]
      %v737 = vld [vmem:[%s735 + $0x8] sm:$0xff]
      %v738 = vld [vmem:[%s735 + $0x10] sm:$0xff]
      %v739 = vld [vmem:[%s735 + $0x18] sm:$0xff]
      %v740 = vld [vmem:[%s735 + $0x20] sm:$0xff]
      %v741 = vld [vmem:[%s735 + $0x28] sm:$0xff]
      %v742 = vld [vmem:[%s735 + $0x30] sm:$0xff]
      %v743 = vld [vmem:[%s735 + $0x38] sm:$0xff]
      %v744 = vmul.f32 %v736, %v732
      %v745 = vmul.f32 %v737, %v732
      %v746 = vmul.f32 %v738, %v732
      %v747 = vmul.f32 %v739, %v732
      %v748 = vmul.f32 %v740, %v732
      %v749 = vmul.f32 %v741, %v732
      %v750 = vmul.f32 %v742, %v732
      %v751 = vmul.f32 %v743, %v732
      %v752 = vadd.f32 %v719, %v744
      %v753 = vadd.f32 %v720, %v745
      %v754 = vadd.f32 %v721, %v746
      %v755 = vadd.f32 %v722, %v747
      %v756 = vadd.f32 %v723, %v748
      %v757 = vadd.f32 %v724, %v749
      %v758 = vadd.f32 %v725, %v750
      %v759 = vadd.f32 %v726, %v751
      %s760 = scalar_lea.vmem %s2, 32
      %v761 = vld [vmem:[%s760] sm:$0xff]
      %v762 = vlaneseq
      %v763 = vshrl.u32 %v762, 7
      %v764 = vsub.s32 4, %v763
      %v765 = vrot.slane %v320, %v764
      %v766 = vmul.f32 %v761, %v765
      %v767 = vadd.f32 %v734, %v766
      %s768 = scalar_lea.vmem %s1, 256
      %v769 = vld [vmem:[%s768] sm:$0xff]
      %v770 = vld [vmem:[%s768 + $0x8] sm:$0xff]
      %v771 = vld [vmem:[%s768 + $0x10] sm:$0xff]
      %v772 = vld [vmem:[%s768 + $0x18] sm:$0xff]
      %v773 = vld [vmem:[%s768 + $0x20] sm:$0xff]
      %v774 = vld [vmem:[%s768 + $0x28] sm:$0xff]
      %v775 = vld [vmem:[%s768 + $0x30] sm:$0xff]
      %v776 = vld [vmem:[%s768 + $0x38] sm:$0xff]
      %v777 = vmul.f32 %v769, %v765
      %v778 = vmul.f32 %v770, %v765
      %v779 = vmul.f32 %v771, %v765
      %v780 = vmul.f32 %v772, %v765
      %v781 = vmul.f32 %v773, %v765
      %v782 = vmul.f32 %v774, %v765
      %v783 = vmul.f32 %v775, %v765
      %v784 = vmul.f32 %v776, %v765
      %v785 = vadd.f32 %v752, %v777
      %v786 = vadd.f32 %v753, %v778
      %v787 = vadd.f32 %v754, %v779
      %v788 = vadd.f32 %v755, %v780
      %v789 = vadd.f32 %v756, %v781
      %v790 = vadd.f32 %v757, %v782
      %v791 = vadd.f32 %v758, %v783
      %v792 = vadd.f32 %v759, %v784
      %s793 = scalar_lea.vmem %s2, 40
      %v794 = vld [vmem:[%s793] sm:$0xff]
      %v795 = vlaneseq
      %v796 = vshrl.u32 %v795, 7
      %v797 = vsub.s32 5, %v796
      %v798 = vrot.slane %v320, %v797
      %v799 = vmul.f32 %v794, %v798
      %v800 = vadd.f32 %v767, %v799
      %s801 = scalar_lea.vmem %s1, 320
      %v802 = vld [vmem:[%s801] sm:$0xff]
      %v803 = vld [vmem:[%s801 + $0x8] sm:$0xff]
      %v804 = vld [vmem:[%s801 + $0x10] sm:$0xff]
      %v805 = vld [vmem:[%s801 + $0x18] sm:$0xff]
      %v806 = vld [vmem:[%s801 + $0x20] sm:$0xff]
      %v807 = vld [vmem:[%s801 + $0x28] sm:$0xff]
      %v808 = vld [vmem:[%s801 + $0x30] sm:$0xff]
      %v809 = vld [vmem:[%s801 + $0x38] sm:$0xff]
      %v810 = vmul.f32 %v802, %v798
      %v811 = vmul.f32 %v803, %v798
      %v812 = vmul.f32 %v804, %v798
      %v813 = vmul.f32 %v805, %v798
      %v814 = vmul.f32 %v806, %v798
      %v815 = vmul.f32 %v807, %v798
      %v816 = vmul.f32 %v808, %v798
      %v817 = vmul.f32 %v809, %v798
      %v818 = vadd.f32 %v785, %v810
      %v819 = vadd.f32 %v786, %v811
      %v820 = vadd.f32 %v787, %v812
      %v821 = vadd.f32 %v788, %v813
      %v822 = vadd.f32 %v789, %v814
      %v823 = vadd.f32 %v790, %v815
      %v824 = vadd.f32 %v791, %v816
      %v825 = vadd.f32 %v792, %v817
      %s826 = scalar_lea.vmem %s2, 48
      %v827 = vld [vmem:[%s826] sm:$0xff]
      %v828 = vlaneseq
      %v829 = vshrl.u32 %v828, 7
      %v830 = vsub.s32 6, %v829
      %v831 = vrot.slane %v320, %v830
      %v832 = vmul.f32 %v827, %v831
      %v833 = vadd.f32 %v800, %v832
      %s834 = scalar_lea.vmem %s1, 384
      %v835 = vld [vmem:[%s834] sm:$0xff]
      %v836 = vld [vmem:[%s834 + $0x8] sm:$0xff]
      %v837 = vld [vmem:[%s834 + $0x10] sm:$0xff]
      %v838 = vld [vmem:[%s834 + $0x18] sm:$0xff]
      %v839 = vld [vmem:[%s834 + $0x20] sm:$0xff]
      %v840 = vld [vmem:[%s834 + $0x28] sm:$0xff]
      %v841 = vld [vmem:[%s834 + $0x30] sm:$0xff]
      %v842 = vld [vmem:[%s834 + $0x38] sm:$0xff]
      %v843 = vmul.f32 %v835, %v831
      %v844 = vmul.f32 %v836, %v831
      %v845 = vmul.f32 %v837, %v831
      %v846 = vmul.f32 %v838, %v831
      %v847 = vmul.f32 %v839, %v831
      %v848 = vmul.f32 %v840, %v831
      %v849 = vmul.f32 %v841, %v831
      %v850 = vmul.f32 %v842, %v831
      %v851 = vadd.f32 %v818, %v843
      %v852 = vadd.f32 %v819, %v844
      %v853 = vadd.f32 %v820, %v845
      %v854 = vadd.f32 %v821, %v846
      %v855 = vadd.f32 %v822, %v847
      %v856 = vadd.f32 %v823, %v848
      %v857 = vadd.f32 %v824, %v849
      %v858 = vadd.f32 %v825, %v850
      %s859 = scalar_lea.vmem %s2, 56
      %v860 = vld [vmem:[%s859] sm:$0xff]
      %v861 = vlaneseq
      %v862 = vshrl.u32 %v861, 7
      %v863 = vsub.s32 7, %v862
      %v864 = vrot.slane %v320, %v863
      %v865 = vmul.f32 %v860, %v864
      %v866 = vadd.f32 %v833, %v865
      %s867 = scalar_lea.vmem %s1, 448
      %v868 = vld [vmem:[%s867] sm:$0xff]
      %v869 = vld [vmem:[%s867 + $0x8] sm:$0xff]
      %v870 = vld [vmem:[%s867 + $0x10] sm:$0xff]
      %v871 = vld [vmem:[%s867 + $0x18] sm:$0xff]
      %v872 = vld [vmem:[%s867 + $0x20] sm:$0xff]
      %v873 = vld [vmem:[%s867 + $0x28] sm:$0xff]
      %v874 = vld [vmem:[%s867 + $0x30] sm:$0xff]
      %v875 = vld [vmem:[%s867 + $0x38] sm:$0xff]
      %v876 = vmul.f32 %v868, %v864
      %v877 = vmul.f32 %v869, %v864
      %v878 = vmul.f32 %v870, %v864
      %v879 = vmul.f32 %v871, %v864
      %v880 = vmul.f32 %v872, %v864
      %v881 = vmul.f32 %v873, %v864
      %v882 = vmul.f32 %v874, %v864
      %v883 = vmul.f32 %v875, %v864
      %v884 = vadd.f32 %v851, %v876
      %v885 = vadd.f32 %v852, %v877
      %v886 = vadd.f32 %v853, %v878
      %v887 = vadd.f32 %v854, %v879
      %v888 = vadd.f32 %v855, %v880
      %v889 = vadd.f32 %v856, %v881
      %v890 = vadd.f32 %v857, %v882
      %v891 = vadd.f32 %v858, %v883
      %v892 = vadd.f32 %v638, %v866
      %893 = vst.msk [vmem:[%s282] sm:$0xff] %vm337, %v892
      %v894 = vmul.f32 %v304, %v312
      %v895 = vmul.f32 %v305, %v313
      %v896 = vmul.f32 %v306, %v314
      %v897 = vmul.f32 %v307, %v315
      %v898 = vmul.f32 %v308, %v316
      %v899 = vmul.f32 %v309, %v317
      %v900 = vmul.f32 %v310, %v318
      %v901 = vmul.f32 %v311, %v319
      %v902 = vadd.f32 %v894, %v884
      %v903 = vadd.f32 %v895, %v885
      %v904 = vadd.f32 %v896, %v886
      %v905 = vadd.f32 %v897, %v887
      %v906 = vadd.f32 %v898, %v888
      %v907 = vadd.f32 %v899, %v889
      %v908 = vadd.f32 %v900, %v890
      %v909 = vadd.f32 %v901, %v891
      %910 = vst.msk [vmem:[#allocation2] sm:$0xff] %vm337, %v902
      %911 = vst.msk [vmem:[#allocation2 + $0x8] sm:$0xff] %vm337, %v903
      %912 = vst.msk [vmem:[#allocation2 + $0x10] sm:$0xff] %vm337, %v904
      %913 = vst.msk [vmem:[#allocation2 + $0x18] sm:$0xff] %vm337, %v905
      %914 = vst.msk [vmem:[#allocation2 + $0x20] sm:$0xff] %vm337, %v906
      %915 = vst.msk [vmem:[#allocation2 + $0x28] sm:$0xff] %vm337, %v907
      %916 = vst.msk [vmem:[#allocation2 + $0x30] sm:$0xff] %vm337, %v908
      %917 = vst.msk [vmem:[#allocation2 + $0x38] sm:$0xff] %vm337, %v909
      %p918 = scmp.lt.s32.totalorder %s21, 0
      %s919 = scalar_select %p918, %s21, 0
      %p920 = scmp.lt.s32.totalorder %s22, 1
      %s921 = scalar_select %p920, %s22, 1
      %s922 = smul.addr %s919, 2
      %s923 = sadd.s32 %s921, %s922
      %s924 = smul.addr %s923, 8
      %s925 = scalar_lea.vmem %s6, %s924
      // Predicated region
      $region49: #{s5_ssm_forward.1} parent=43 // pred_check
        %p926 = pneg %p182
      $region50: #{s5_ssm_forward.1} parent=43 // pred_check_branch
        %928 = sbr.rel (%p926) target = $region52
      $region51: #{s5_ssm_forward.1} parent=43 // pred_region
        _
      $region52: #{s5_ssm_forward.1} parent=43 // pred_fallthru
        _
    $region44: #{s5_ssm_forward.1} parent=5 // pred_fallthru
      _
    %p929 = scmp.le.s32.totalorder 2, %s12
    // Predicated region
    $region53: #{s5_ssm_forward.1} parent=5 // pred_check
      %p930 = pneg %p929
    $region54: #{s5_ssm_forward.1} parent=5 // pred_check_branch
      %932 = sbr.rel (%p930) target = $region56
    $region55: #{s5_ssm_forward.1} parent=5 // pred_region
      %s933 = ssub.s32 %s12, 2
      // Predicated region
      $region57: #{s5_ssm_forward.1} parent=55 // pred_check
        %p934 = pneg %p188
      $region58: #{s5_ssm_forward.1} parent=55 // pred_check_branch
        %936 = sbr.rel (%p934) target = $region60
      $region59: #{s5_ssm_forward.1} parent=55 // pred_region
        %p937 = scmp.lt.s32.totalorder %s23, 0
        %s938 = scalar_select %p937, %s23, 0
        %p939 = scmp.lt.s32.totalorder %s24, 1
        %s940 = scalar_select %p939, %s24, 1
        %s941 = smul.addr %s938, 2
        %s942 = sadd.s32 %s940, %s941
        %s943 = smul.addr %s942, 8
        %s944 = scalar_lea.vmem %s6, %s943
      $region60: #{s5_ssm_forward.1} parent=55 // pred_fallthru
        _
    $region56: #{s5_ssm_forward.1} parent=5 // pred_fallthru
      _
  $region6: #{s5_ssm_forward.1} parent=0 // loop_footer
    %s16 = sadd.s32 1, %s12
  $region7: #{s5_ssm_forward.1} parent=0 // loop_footer_branch
    %11 = sbr.rel target = $region3
  $region8: #{s5_ssm_forward.1} parent=0 // loop_exit
    _

</llo_original>
